<compile_context>
chip_gen: v5e
topology: v5e:2x2
jax: 0.10.0
libtpu: 0.0.40
codegen_flags: <defaults>
</compile_context>

<pallas_src>
import functools

import jax
import jax.numpy as jnp
import numpy as np
from jax import lax
from jax.experimental import pallas as pl
from jax.experimental.pallas import tpu as pltpu

EPS = 1e-5
HALO = 8  # >= 3 (receptive-field halo of the 3-layer conv stack), multiple-of-8 aligned


def _round_up(n, m):
    return ((n + m - 1) // m) * m


def dino_cnn_kernel(x_ref,
                    w1p_ref, w1m_ref, w1n_ref, b1_ref,
                    w2p_ref, w2m_ref, w2n_ref, b2_ref,
                    w3p_ref, w3m_ref, w3n_ref, b3_ref,
                    wfc_ref, bfc_ref,
                    out_ref,
                    scr_ref,
                    *, seq_len, tile_t, halo):
    tile_w = tile_t + 2 * halo
    num_filters = scr_ref.shape[-1]

    i = pl.program_id(0)
    base = pl.multiple_of(i * tile_t, 8)  # window origin in the padded input (pad_top=2*halo)

    # Only tiles whose halo window touches rows outside [0, seq_len) need masking.
    need_mask = jnp.logical_or(i == 0, (i + 1) * tile_t + halo > seq_len)

    def valid_mask():
        rows = lax.broadcasted_iota(jnp.int32, (tile_w, num_filters), 0)
        g = rows + (i * tile_t - halo)          # global row index of each window row
        return jnp.logical_and(g >= 0, g < seq_len)

    def conv_layer(h_prev, h_mid, h_next, wp_ref, wm_ref, wn_ref, b_ref, write_masked):
        # Three accumulated MXU dots (K = Cin), f32 accumulation.
        y = jnp.dot(h_prev, wp_ref[...], preferred_element_type=jnp.float32)
        y = y + jnp.dot(h_mid, wm_ref[...], preferred_element_type=jnp.float32)
        y = y + jnp.dot(h_next, wn_ref[...], preferred_element_type=jnp.float32)
        # Folded conv-bias + eval-mode BN shift + ReLU, always f32 (safe on v5e VPU).
        y = jnp.maximum(y + b_ref[...], 0.0)
        if not write_masked:
            return y
        # Spill to the halo-extended scratch (single cast to the matmul dtype here).
        scr_ref[pl.ds(halo, tile_w), :] = y.astype(scr_ref.dtype)

        @pl.when(need_mask)
        def _():
            # Zero rows outside [0, seq_len) so the next conv sees 'same' zero padding.
            # Edge tiles only; interior tiles skip the iota/compare/select entirely.
            scr_ref[pl.ds(halo, tile_w), :] = jnp.where(
                valid_mask(), y, 0.0).astype(scr_ref.dtype)
        return None

    # Layer 1: shifted windows sliced directly from the VMEM-resident padded input.
    conv_layer(x_ref[pl.ds(base + halo - 1, tile_w), :],
               x_ref[pl.ds(base + halo, tile_w), :],
               x_ref[pl.ds(base + halo + 1, tile_w), :],
               w1p_ref, w1m_ref, w1n_ref, b1_ref, True)

    # Layer 2: shifted slices re-read from scratch (stale edge rows only corrupt halo rows).
    conv_layer(scr_ref[pl.ds(halo - 1, tile_w), :],
               scr_ref[pl.ds(halo, tile_w), :],
               scr_ref[pl.ds(halo + 1, tile_w), :],
               w2p_ref, w2m_ref, w2n_ref, b2_ref, True)

    # Layer 3: no masking needed -- out-of-range rows are sliced off in the wrapper.
    y3 = conv_layer(scr_ref[pl.ds(halo - 1, tile_w), :],
                    scr_ref[pl.ds(halo, tile_w), :],
                    scr_ref[pl.ds(halo + 1, tile_w), :],
                    w3p_ref, w3m_ref, w3n_ref, b3_ref, False)

    h_keep = y3[halo:halo + tile_t, :]          # static, aligned interior slice [tile_t, F]
    # 1x1 conv head as multiply + lane reduction (avoids an N=1 MXU matmul); stays f32.
    conf = jnp.sum(h_keep * wfc_ref[...], axis=-1, keepdims=True) + bfc_ref[...]
    out_ref[...] = conf.astype(out_ref.dtype)


def dino_cnn_forward(x, kernel_params, *, tile_t=512):
    """x: [T, input_dim] f32 -> confidence_scores: [T]  (matches DinoCNN.forward)."""
    T, cin = x.shape
    dt = kernel_params[0].dtype                      # matmul dtype (f32 or bf16)
    num_filters = kernel_params[0].shape[-1]

    tile = _round_up(int(min(tile_t, _round_up(T, 8))), 8)
    n_tiles = -(-T // tile)
    t_pad = n_tiles * tile
    pad_top = 2 * HALO                               # halo + 1-row tap slack, 8-aligned
    t_total = t_pad + 2 * pad_top

    # Zero-padded input kept fully VMEM-resident (constant-index block) so overlapping halo
    # windows are plain pl.ds slices.  Cast once here for the bf16 matmul path.
    # TODO(synk): for very long sequences (esp. v7x's 64 MiB VMEM), stream x with per-tile
    # halo windows (pl.Element offsets or a manual double-buffered DMA) instead.
    x_pad = jnp.pad(x.astype(dt), ((pad_top, t_total - pad_top - T), (0, 0)))

    kernel = functools.partial(dino_cnn_kernel, seq_len=T, tile_t=tile, halo=HALO)

    # Constant-index specs -> small params fetched once, resident across all T tiles.
    param_specs = [pl.BlockSpec(p.shape, lambda i: (0, 0)) for p in kernel_params]

    grid_spec = pltpu.PrefetchScalarGridSpec(
        num_scalar_prefetch=0,
        grid=(n_tiles,),
        in_specs=[pl.BlockSpec((t_total, cin), lambda i: (0, 0))] + param_specs,
        out_specs=pl.BlockSpec((tile, 1), lambda i: (i, 0)),
        scratch_shapes=[pltpu.VMEM((tile + 4 * HALO, num_filters), dt)],
    )

    # TODO(synk): on v7x, verify in xprof that the "parallel" T axis shards across both
    # TensorCores; if not, switch to pltpu.CORE_PARALLEL / an explicit core_map.
    out = pl.pallas_call(
        kernel,
        out_shape=jax.ShapeDtypeStruct((t_pad, 1), jnp.float32),
        grid_spec=grid_spec,
        compiler_params=pltpu.CompilerParams(dimension_semantics=("parallel",)),
    )(x_pad, *kernel_params)
    return out[:T, 0]


def make_params(key, input_dim, num_filters=64, kernel_size=3):
    """Deterministic synthetic parameters in PyTorch layouts."""
    ks = jax.random.split(key, 8)
    W1 = 0.1 * jax.random.normal(ks[0], (num_filters, input_dim, kernel_size), jnp.float32)
    b1 = 0.1 * jax.random.normal(ks[1], (num_filters,), jnp.float32)
    W2 = 0.1 * jax.random.normal(ks[2], (num_filters, num_filters, kernel_size), jnp.float32)
    b2 = 0.1 * jax.random.normal(ks[3], (num_filters,), jnp.float32)
    W3 = 0.1 * jax.random.normal(ks[4], (num_filters, num_filters, kernel_size), jnp.float32)
    b3 = 0.1 * jax.random.normal(ks[5], (num_filters,), jnp.float32)
    Wf = 0.1 * jax.random.normal(ks[6], (1, num_filters, 1), jnp.float32)
    bf = 0.1 * jax.random.normal(ks[7], (1,), jnp.float32)
    # BatchNorm1d defaults (fresh module, eval mode): gamma=1, beta=0, mean=0, var=1.
    gamma = jnp.ones((num_filters,), jnp.float32)
    beta = jnp.zeros((num_filters,), jnp.float32)
    mean = jnp.zeros((num_filters,), jnp.float32)
    var = jnp.ones((num_filters,), jnp.float32)
    return (W1, b1, W2, b2, W3, b3, Wf, bf, gamma, beta, mean, var)


def to_kernel_params(p, matmul_dtype=jnp.float32):
    """Fold conv bias + eval-mode BN into weights/shift; split K=3 into per-tap matrices."""
    W1, b1, W2, b2, W3, b3, Wf, bf, gamma, beta, mean, var = p
    scale = gamma / jnp.sqrt(var + EPS)                       # [F]

    def fold(W, conv_bias):
        # [Cout, Cin, 3] -> three [Cin, Cout] tap matrices with BN scale folded in (in f32,
        # BEFORE any bf16 cast); shift = folded conv-bias + BN shift, kept f32.
        taps = [(W[:, :, k].T * scale[None, :]).astype(matmul_dtype) for k in range(3)]
        shift = ((conv_bias - mean) * scale + beta).reshape(1, -1)
        return taps[0], taps[1], taps[2], shift

    w1p, w1m, w1n, s1 = fold(W1, b1)
    w2p, w2m, w2n, s2 = fold(W2, b2)
    w3p, w3m, w3n, s3 = fold(W3, b3)
    wfc_row = Wf[:, :, 0].reshape(1, -1)                      # [1, F], stays f32
    bfc = bf.reshape(1, 1)
    return (w1p, w1m, w1n, s1,
            w2p, w2m, w2n, s2,
            w3p, w3m, w3n, s3,
            wfc_row, bfc)


def reference_forward(x, p):
    """Plain-JAX reference mirroring the PyTorch forward (NCL conv, eval-mode BN)."""
    W1, b1, W2, b2, W3, b3, Wf, bf, gamma, beta, mean, var = p
    z = x.T[None]                                             # (1, C, T)

    def block(z, W, b):
        z = lax.conv_general_dilated(z, W, (1,), [(1, 1)],
                                     dimension_numbers=('NCH', 'OIH', 'NCH'))
        z = z + b[None, :, None]
        z = (z - mean[None, :, None]) / jnp.sqrt(var[None, :, None] + EPS)
        z = z * gamma[None, :, None] + beta[None, :, None]
        return jnp.maximum(z, 0.0)

    z = block(z, W1, b1)
    z = block(z, W2, b2)
    z = block(z, W3, b3)
    z = lax.conv_general_dilated(z, Wf, (1,), [(0, 0)],
                                 dimension_numbers=('NCH', 'OIH', 'NCH'))
    z = z + bf[None, :, None]
    return z[0, 0, :]                                         # [T]


if __name__ == "__main__":
    # TODO(synk): BatchNorm is implemented in eval mode (running stats); PyTorch
    # train-mode batch statistics are not reproduced here.
    INPUT_DIM, NUM_FILTERS = 32, 64

    key = jax.random.PRNGKey(0)
    kx, kp = jax.random.split(key)
    params = make_params(kp, INPUT_DIM, NUM_FILTERS)

    # T=16: single-tile; T=1030: exercises the "upper halo spills past T on a non-last tile"
    # masking predicate; T=2000: multi-tile grid with unmasked interior tiles.
    for T in (16, 1030, 2000):
        x = jax.random.normal(jax.random.fold_in(kx, T), (T, INPUT_DIM), jnp.float32)
        ref = jax.block_until_ready(reference_forward(x, params))

        # f32 matmul path (tight tolerance).
        kparams_f32 = to_kernel_params(params, jnp.float32)
        out = jax.block_until_ready(dino_cnn_forward(x, kparams_f32))
        assert out.shape == (T,)
        np.testing.assert_allclose(np.asarray(out), np.asarray(ref), rtol=1e-4, atol=1e-4)

        # bf16 matmul-input path (MXU-native; f32 epilogue) -- loose check.
        kparams_bf16 = to_kernel_params(params, jnp.bfloat16)
        out_bf16 = jax.block_until_ready(dino_cnn_forward(x, kparams_bf16))
        np.testing.assert_allclose(np.asarray(out_bf16), np.asarray(ref), rtol=1e-1, atol=1e-1)

    print("KERNEL_OK")
</pallas_src>

<mosaic_0001>
module attributes {stable_mosaic.version = 11 : i64} {
  func.func @dino_cnn_kernel(%arg0: i32, %arg1: memref<48x32xf32, #tpu.memory_space<vmem>>, %arg2: memref<32x64xf32, #tpu.memory_space<vmem>>, %arg3: memref<32x64xf32, #tpu.memory_space<vmem>>, %arg4: memref<32x64xf32, #tpu.memory_space<vmem>>, %arg5: memref<1x64xf32, #tpu.memory_space<vmem>>, %arg6: memref<64x64xf32, #tpu.memory_space<vmem>>, %arg7: memref<64x64xf32, #tpu.memory_space<vmem>>, %arg8: memref<64x64xf32, #tpu.memory_space<vmem>>, %arg9: memref<1x64xf32, #tpu.memory_space<vmem>>, %arg10: memref<64x64xf32, #tpu.memory_space<vmem>>, %arg11: memref<64x64xf32, #tpu.memory_space<vmem>>, %arg12: memref<64x64xf32, #tpu.memory_space<vmem>>, %arg13: memref<1x64xf32, #tpu.memory_space<vmem>>, %arg14: memref<1x64xf32, #tpu.memory_space<vmem>>, %arg15: memref<1x1xf32, #tpu.memory_space<vmem>>, %arg16: memref<16x1xf32, #tpu.memory_space<vmem>>, %arg17: memref<48x64xf32, #tpu.memory_space<vmem>>) attributes {dimension_semantics = [#tpu.dimension_semantics<parallel>], iteration_bounds = array<i64: 1>, scalar_prefetch = 0 : i64, scratch_operands = 1 : i64, tpu.core_type = #tpu.core_type<tc>, window_params = [{pipeline_mode = #tpu.pipeline_mode<synchronous>, transform_indices = @transform_0, window_bounds = array<i64: 48, 32>}, {pipeline_mode = #tpu.pipeline_mode<synchronous>, transform_indices = @transform_1, window_bounds = array<i64: 32, 64>}, {pipeline_mode = #tpu.pipeline_mode<synchronous>, transform_indices = @transform_2, window_bounds = array<i64: 32, 64>}, {pipeline_mode = #tpu.pipeline_mode<synchronous>, transform_indices = @transform_3, window_bounds = array<i64: 32, 64>}, {pipeline_mode = #tpu.pipeline_mode<synchronous>, transform_indices = @transform_4, window_bounds = array<i64: 1, 64>}, {pipeline_mode = #tpu.pipeline_mode<synchronous>, transform_indices = @transform_5, window_bounds = array<i64: 64, 64>}, {pipeline_mode = #tpu.pipeline_mode<synchronous>, transform_indices = @transform_6, window_bounds = array<i64: 64, 64>}, {pipeline_mode = #tpu.pipeline_mode<synchronous>, transform_indices = @transform_7, window_bounds = array<i64: 64, 64>}, {pipeline_mode = #tpu.pipeline_mode<synchronous>, transform_indices = @transform_8, window_bounds = array<i64: 1, 64>}, {pipeline_mode = #tpu.pipeline_mode<synchronous>, transform_indices = @transform_9, window_bounds = array<i64: 64, 64>}, {pipeline_mode = #tpu.pipeline_mode<synchronous>, transform_indices = @transform_10, window_bounds = array<i64: 64, 64>}, {pipeline_mode = #tpu.pipeline_mode<synchronous>, transform_indices = @transform_11, window_bounds = array<i64: 64, 64>}, {pipeline_mode = #tpu.pipeline_mode<synchronous>, transform_indices = @transform_12, window_bounds = array<i64: 1, 64>}, {pipeline_mode = #tpu.pipeline_mode<synchronous>, transform_indices = @transform_13, window_bounds = array<i64: 1, 64>}, {pipeline_mode = #tpu.pipeline_mode<synchronous>, transform_indices = @transform_14, window_bounds = array<i64: 1, 1>}, {transform_indices = @transform_15, window_bounds = array<i64: 16, 1>}]} {
    %c16_i32 = arith.constant 16 : i32
    %0 = arith.muli %arg0, %c16_i32 : i32
    %1 = tpu.assume_multiple %0, 8 : i32
    %c0_i32 = arith.constant 0 : i32
    %2 = arith.cmpi eq, %arg0, %c0_i32 : i32
    %c1_i32 = arith.constant 1 : i32
    %3 = arith.addi %arg0, %c1_i32 : i32
    %c16_i32_0 = arith.constant 16 : i32
    %4 = arith.muli %3, %c16_i32_0 : i32
    %c8_i32 = arith.constant 8 : i32
    %5 = arith.addi %4, %c8_i32 : i32
    %c16_i32_1 = arith.constant 16 : i32
    %6 = arith.cmpi sgt, %5, %c16_i32_1 : i32
    %7 = arith.ori %2, %6 : i1
    %c8_i32_2 = arith.constant 8 : i32
    %8 = arith.addi %1, %c8_i32_2 : i32
    %c1_i32_3 = arith.constant 1 : i32
    %9 = arith.subi %8, %c1_i32_3 : i32
    %10 = arith.index_cast %9 : i32 to index
    %c0 = arith.constant 0 : index
    %11 = vector.load %arg1[%10, %c0] : memref<48x32xf32, #tpu.memory_space<vmem>>, vector<32x32xf32>
    %c8_i32_4 = arith.constant 8 : i32
    %12 = arith.addi %1, %c8_i32_4 : i32
    %13 = arith.index_cast %12 : i32 to index
    %c0_5 = arith.constant 0 : index
    %14 = vector.load %arg1[%13, %c0_5] : memref<48x32xf32, #tpu.memory_space<vmem>>, vector<32x32xf32>
    %c8_i32_6 = arith.constant 8 : i32
    %15 = arith.addi %1, %c8_i32_6 : i32
    %c1_i32_7 = arith.constant 1 : i32
    %16 = arith.addi %15, %c1_i32_7 : i32
    %17 = arith.index_cast %16 : i32 to index
    %c0_8 = arith.constant 0 : index
    %18 = vector.load %arg1[%17, %c0_8] : memref<48x32xf32, #tpu.memory_space<vmem>>, vector<32x32xf32>
    %c0_9 = arith.constant 0 : index
    %c0_10 = arith.constant 0 : index
    %19 = vector.load %arg2[%c0_9, %c0_10] : memref<32x64xf32, #tpu.memory_space<vmem>>, vector<32x64xf32>
    %cst = arith.constant dense<0.000000e+00> : vector<32x64xf32>
    %20 = tpu.matmul %11, %19, %cst {dimension_numbers = #tpu.dot_dimension_numbers<[1], [0], [0], [1], [0, 0, 1, 1], [], []>} : vector<32x32xf32>, vector<32x64xf32>, vector<32x64xf32> -> vector<32x64xf32>
    %c0_11 = arith.constant 0 : index
    %c0_12 = arith.constant 0 : index
    %21 = vector.load %arg3[%c0_11, %c0_12] : memref<32x64xf32, #tpu.memory_space<vmem>>, vector<32x64xf32>
    %cst_13 = arith.constant dense<0.000000e+00> : vector<32x64xf32>
    %22 = tpu.matmul %14, %21, %cst_13 {dimension_numbers = #tpu.dot_dimension_numbers<[1], [0], [0], [1], [0, 0, 1, 1], [], []>} : vector<32x32xf32>, vector<32x64xf32>, vector<32x64xf32> -> vector<32x64xf32>
    %23 = arith.addf %20, %22 : vector<32x64xf32>
    %c0_14 = arith.constant 0 : index
    %c0_15 = arith.constant 0 : index
    %24 = vector.load %arg4[%c0_14, %c0_15] : memref<32x64xf32, #tpu.memory_space<vmem>>, vector<32x64xf32>
    %cst_16 = arith.constant dense<0.000000e+00> : vector<32x64xf32>
    %25 = tpu.matmul %18, %24, %cst_16 {dimension_numbers = #tpu.dot_dimension_numbers<[1], [0], [0], [1], [0, 0, 1, 1], [], []>} : vector<32x32xf32>, vector<32x64xf32>, vector<32x64xf32> -> vector<32x64xf32>
    %26 = arith.addf %23, %25 : vector<32x64xf32>
    %c0_17 = arith.constant 0 : index
    %c0_18 = arith.constant 0 : index
    %27 = vector.load %arg5[%c0_17, %c0_18] : memref<1x64xf32, #tpu.memory_space<vmem>>, vector<1x64xf32>
    %28 = vector.broadcast %27 : vector<1x64xf32> to vector<32x64xf32>
    %29 = arith.addf %26, %28 : vector<32x64xf32>
    %cst_19 = arith.constant 0.000000e+00 : f32
    %30 = vector.broadcast %cst_19 : f32 to vector<32x64xf32>
    %31 = arith.maximumf %29, %30 : vector<32x64xf32>
    %c8 = arith.constant 8 : index
    %c0_20 = arith.constant 0 : index
    %32 = vector.load %arg17[%c8, %c0_20] : memref<48x64xf32, #tpu.memory_space<vmem>>, vector<32x64xf32>
    tpu.vector_store %arg17[%c8, %c0_20], %31 {strides = array<i32>} : memref<48x64xf32, #tpu.memory_space<vmem>>, vector<32x64xf32>,
    %33 = arith.extui %7 : i1 to i32
    %c0_i32_21 = arith.constant 0 : i32
    %34 = arith.cmpi ne, %33, %c0_i32_21 : i32
    scf.if %34 {
      %80 = tpu.iota {dimensions = array<i32: 0>} : vector<32x64xi32>
      %c16_i32_66 = arith.constant 16 : i32
      %81 = arith.muli %arg0, %c16_i32_66 : i32
      %c8_i32_67 = arith.constant 8 : i32
      %82 = arith.subi %81, %c8_i32_67 : i32
      %83 = vector.broadcast %82 : i32 to vector<32x64xi32>
      %84 = arith.addi %80, %83 : vector<32x64xi32>
      %c0_i32_68 = arith.constant 0 : i32
      %85 = vector.broadcast %c0_i32_68 : i32 to vector<32x64xi32>
      %86 = arith.cmpi sge, %84, %85 : vector<32x64xi32>
      %c16_i32_69 = arith.constant 16 : i32
      %87 = vector.broadcast %c16_i32_69 : i32 to vector<32x64xi32>
      %88 = arith.cmpi slt, %84, %87 : vector<32x64xi32>
      %89 = arith.andi %86, %88 : vector<32x64xi1>
      %cst_70 = arith.constant 0.000000e+00 : f32
      %90 = vector.broadcast %cst_70 : f32 to vector<32x64xf32>
      %91 = arith.select %89, %31, %90 : vector<32x64xi1>, vector<32x64xf32>
      %c8_71 = arith.constant 8 : index
      %c0_72 = arith.constant 0 : index
      %92 = vector.load %arg17[%c8_71, %c0_72] : memref<48x64xf32, #tpu.memory_space<vmem>>, vector<32x64xf32>
      tpu.vector_store %arg17[%c8_71, %c0_72], %91 {strides = array<i32>} : memref<48x64xf32, #tpu.memory_space<vmem>>, vector<32x64xf32>,
    } else {
    }
    %c7 = arith.constant 7 : index
    %c0_22 = arith.constant 0 : index
    %35 = vector.load %arg17[%c7, %c0_22] : memref<48x64xf32, #tpu.memory_space<vmem>>, vector<32x64xf32>
    %c8_23 = arith.constant 8 : index
    %c0_24 = arith.constant 0 : index
    %36 = vector.load %arg17[%c8_23, %c0_24] : memref<48x64xf32, #tpu.memory_space<vmem>>, vector<32x64xf32>
    %c9 = arith.constant 9 : index
    %c0_25 = arith.constant 0 : index
    %37 = vector.load %arg17[%c9, %c0_25] : memref<48x64xf32, #tpu.memory_space<vmem>>, vector<32x64xf32>
    %c0_26 = arith.constant 0 : index
    %c0_27 = arith.constant 0 : index
    %38 = vector.load %arg6[%c0_26, %c0_27] : memref<64x64xf32, #tpu.memory_space<vmem>>, vector<64x64xf32>
    %cst_28 = arith.constant dense<0.000000e+00> : vector<32x64xf32>
    %39 = tpu.matmul %35, %38, %cst_28 {dimension_numbers = #tpu.dot_dimension_numbers<[1], [0], [0], [1], [0, 0, 1, 1], [], []>} : vector<32x64xf32>, vector<64x64xf32>, vector<32x64xf32> -> vector<32x64xf32>
    %c0_29 = arith.constant 0 : index
    %c0_30 = arith.constant 0 : index
    %40 = vector.load %arg7[%c0_29, %c0_30] : memref<64x64xf32, #tpu.memory_space<vmem>>, vector<64x64xf32>
    %cst_31 = arith.constant dense<0.000000e+00> : vector<32x64xf32>
    %41 = tpu.matmul %36, %40, %cst_31 {dimension_numbers = #tpu.dot_dimension_numbers<[1], [0], [0], [1], [0, 0, 1, 1], [], []>} : vector<32x64xf32>, vector<64x64xf32>, vector<32x64xf32> -> vector<32x64xf32>
    %42 = arith.addf %39, %41 : vector<32x64xf32>
    %c0_32 = arith.constant 0 : index
    %c0_33 = arith.constant 0 : index
    %43 = vector.load %arg8[%c0_32, %c0_33] : memref<64x64xf32, #tpu.memory_space<vmem>>, vector<64x64xf32>
    %cst_34 = arith.constant dense<0.000000e+00> : vector<32x64xf32>
    %44 = tpu.matmul %37, %43, %cst_34 {dimension_numbers = #tpu.dot_dimension_numbers<[1], [0], [0], [1], [0, 0, 1, 1], [], []>} : vector<32x64xf32>, vector<64x64xf32>, vector<32x64xf32> -> vector<32x64xf32>
    %45 = arith.addf %42, %44 : vector<32x64xf32>
    %c0_35 = arith.constant 0 : index
    %c0_36 = arith.constant 0 : index
    %46 = vector.load %arg9[%c0_35, %c0_36] : memref<1x64xf32, #tpu.memory_space<vmem>>, vector<1x64xf32>
    %47 = vector.broadcast %46 : vector<1x64xf32> to vector<32x64xf32>
    %48 = arith.addf %45, %47 : vector<32x64xf32>
    %cst_37 = arith.constant 0.000000e+00 : f32
    %49 = vector.broadcast %cst_37 : f32 to vector<32x64xf32>
    %50 = arith.maximumf %48, %49 : vector<32x64xf32>
    %c8_38 = arith.constant 8 : index
    %c0_39 = arith.constant 0 : index
    %51 = vector.load %arg17[%c8_38, %c0_39] : memref<48x64xf32, #tpu.memory_space<vmem>>, vector<32x64xf32>
    tpu.vector_store %arg17[%c8_38, %c0_39], %50 {strides = array<i32>} : memref<48x64xf32, #tpu.memory_space<vmem>>, vector<32x64xf32>,
    %52 = arith.extui %7 : i1 to i32
    %c0_i32_40 = arith.constant 0 : i32
    %53 = arith.cmpi ne, %52, %c0_i32_40 : i32
    scf.if %53 {
      %80 = tpu.iota {dimensions = array<i32: 0>} : vector<32x64xi32>
      %c16_i32_66 = arith.constant 16 : i32
      %81 = arith.muli %arg0, %c16_i32_66 : i32
      %c8_i32_67 = arith.constant 8 : i32
      %82 = arith.subi %81, %c8_i32_67 : i32
      %83 = vector.broadcast %82 : i32 to vector<32x64xi32>
      %84 = arith.addi %80, %83 : vector<32x64xi32>
      %c0_i32_68 = arith.constant 0 : i32
      %85 = vector.broadcast %c0_i32_68 : i32 to vector<32x64xi32>
      %86 = arith.cmpi sge, %84, %85 : vector<32x64xi32>
      %c16_i32_69 = arith.constant 16 : i32
      %87 = vector.broadcast %c16_i32_69 : i32 to vector<32x64xi32>
      %88 = arith.cmpi slt, %84, %87 : vector<32x64xi32>
      %89 = arith.andi %86, %88 : vector<32x64xi1>
      %cst_70 = arith.constant 0.000000e+00 : f32
      %90 = vector.broadcast %cst_70 : f32 to vector<32x64xf32>
      %91 = arith.select %89, %50, %90 : vector<32x64xi1>, vector<32x64xf32>
      %c8_71 = arith.constant 8 : index
      %c0_72 = arith.constant 0 : index
      %92 = vector.load %arg17[%c8_71, %c0_72] : memref<48x64xf32, #tpu.memory_space<vmem>>, vector<32x64xf32>
      tpu.vector_store %arg17[%c8_71, %c0_72], %91 {strides = array<i32>} : memref<48x64xf32, #tpu.memory_space<vmem>>, vector<32x64xf32>,
    } else {
    }
    %c7_41 = arith.constant 7 : index
    %c0_42 = arith.constant 0 : index
    %54 = vector.load %arg17[%c7_41, %c0_42] : memref<48x64xf32, #tpu.memory_space<vmem>>, vector<32x64xf32>
    %c8_43 = arith.constant 8 : index
    %c0_44 = arith.constant 0 : index
    %55 = vector.load %arg17[%c8_43, %c0_44] : memref<48x64xf32, #tpu.memory_space<vmem>>, vector<32x64xf32>
    %c9_45 = arith.constant 9 : index
    %c0_46 = arith.constant 0 : index
    %56 = vector.load %arg17[%c9_45, %c0_46] : memref<48x64xf32, #tpu.memory_space<vmem>>, vector<32x64xf32>
    %c0_47 = arith.constant 0 : index
    %c0_48 = arith.constant 0 : index
    %57 = vector.load %arg10[%c0_47, %c0_48] : memref<64x64xf32, #tpu.memory_space<vmem>>, vector<64x64xf32>
    %cst_49 = arith.constant dense<0.000000e+00> : vector<32x64xf32>
    %58 = tpu.matmul %54, %57, %cst_49 {dimension_numbers = #tpu.dot_dimension_numbers<[1], [0], [0], [1], [0, 0, 1, 1], [], []>} : vector<32x64xf32>, vector<64x64xf32>, vector<32x64xf32> -> vector<32x64xf32>
    %c0_50 = arith.constant 0 : index
    %c0_51 = arith.constant 0 : index
    %59 = vector.load %arg11[%c0_50, %c0_51] : memref<64x64xf32, #tpu.memory_space<vmem>>, vector<64x64xf32>
    %cst_52 = arith.constant dense<0.000000e+00> : vector<32x64xf32>
    %60 = tpu.matmul %55, %59, %cst_52 {dimension_numbers = #tpu.dot_dimension_numbers<[1], [0], [0], [1], [0, 0, 1, 1], [], []>} : vector<32x64xf32>, vector<64x64xf32>, vector<32x64xf32> -> vector<32x64xf32>
    %61 = arith.addf %58, %60 : vector<32x64xf32>
    %c0_53 = arith.constant 0 : index
    %c0_54 = arith.constant 0 : index
    %62 = vector.load %arg12[%c0_53, %c0_54] : memref<64x64xf32, #tpu.memory_space<vmem>>, vector<64x64xf32>
    %cst_55 = arith.constant dense<0.000000e+00> : vector<32x64xf32>
    %63 = tpu.matmul %56, %62, %cst_55 {dimension_numbers = #tpu.dot_dimension_numbers<[1], [0], [0], [1], [0, 0, 1, 1], [], []>} : vector<32x64xf32>, vector<64x64xf32>, vector<32x64xf32> -> vector<32x64xf32>
    %64 = arith.addf %61, %63 : vector<32x64xf32>
    %c0_56 = arith.constant 0 : index
    %c0_57 = arith.constant 0 : index
    %65 = vector.load %arg13[%c0_56, %c0_57] : memref<1x64xf32, #tpu.memory_space<vmem>>, vector<1x64xf32>
    %66 = vector.broadcast %65 : vector<1x64xf32> to vector<32x64xf32>
    %67 = arith.addf %64, %66 : vector<32x64xf32>
    %cst_58 = arith.constant 0.000000e+00 : f32
    %68 = vector.broadcast %cst_58 : f32 to vector<32x64xf32>
    %69 = arith.maximumf %67, %68 : vector<32x64xf32>
    %70 = vector.extract_strided_slice %69 {offsets = [8, 0], sizes = [16, 64], strides = [1, 1]} : vector<32x64xf32> to vector<16x64xf32>
    %c0_59 = arith.constant 0 : index
    %c0_60 = arith.constant 0 : index
    %71 = vector.load %arg14[%c0_59, %c0_60] : memref<1x64xf32, #tpu.memory_space<vmem>>, vector<1x64xf32>
    %72 = vector.broadcast %71 : vector<1x64xf32> to vector<16x64xf32>
    %73 = arith.mulf %70, %72 : vector<16x64xf32>
    %cst_61 = arith.constant dense<0.000000e+00> : vector<16xf32>
    %74 = vector.multi_reduction <add>, %73, %cst_61 [1] : vector<16x64xf32> to vector<16xf32>
    %75 = vector.shape_cast %74 : vector<16xf32> to vector<16x1xf32>
    %c0_62 = arith.constant 0 : index
    %c0_63 = arith.constant 0 : index
    %76 = vector.load %arg15[%c0_62, %c0_63] : memref<1x1xf32, #tpu.memory_space<vmem>>, vector<1x1xf32>
    %77 = vector.broadcast %76 : vector<1x1xf32> to vector<16x1xf32>
    %78 = arith.addf %75, %77 : vector<16x1xf32>
    %c0_64 = arith.constant 0 : index
    %c0_65 = arith.constant 0 : index
    %79 = vector.load %arg16[%c0_64, %c0_65] : memref<16x1xf32, #tpu.memory_space<vmem>>, vector<16x1xf32>
    tpu.vector_store %arg16[%c0_64, %c0_65], %78 {strides = array<i32>} : memref<16x1xf32, #tpu.memory_space<vmem>>, vector<16x1xf32>,
    return
  }
  func.func @transform_0(%arg0: i32) -> (i32, i32) {
    %c0_i32 = arith.constant 0 : i32
    %c0_i32_0 = arith.constant 0 : i32
    %c0_i32_1 = arith.constant 0 : i32
    return %c0_i32, %c0_i32_0 : i32, i32
  }
  func.func @transform_1(%arg0: i32) -> (i32, i32) {
    %c0_i32 = arith.constant 0 : i32
    %c0_i32_0 = arith.constant 0 : i32
    %c0_i32_1 = arith.constant 0 : i32
    return %c0_i32, %c0_i32_0 : i32, i32
  }
  func.func @transform_2(%arg0: i32) -> (i32, i32) {
    %c0_i32 = arith.constant 0 : i32
    %c0_i32_0 = arith.constant 0 : i32
    %c0_i32_1 = arith.constant 0 : i32
    return %c0_i32, %c0_i32_0 : i32, i32
  }
  func.func @transform_3(%arg0: i32) -> (i32, i32) {
    %c0_i32 = arith.constant 0 : i32
    %c0_i32_0 = arith.constant 0 : i32
    %c0_i32_1 = arith.constant 0 : i32
    return %c0_i32, %c0_i32_0 : i32, i32
  }
  func.func @transform_4(%arg0: i32) -> (i32, i32) {
    %c0_i32 = arith.constant 0 : i32
    %c0_i32_0 = arith.constant 0 : i32
    %c0_i32_1 = arith.constant 0 : i32
    return %c0_i32, %c0_i32_0 : i32, i32
  }
  func.func @transform_5(%arg0: i32) -> (i32, i32) {
    %c0_i32 = arith.constant 0 : i32
    %c0_i32_0 = arith.constant 0 : i32
    %c0_i32_1 = arith.constant 0 : i32
    return %c0_i32, %c0_i32_0 : i32, i32
  }
  func.func @transform_6(%arg0: i32) -> (i32, i32) {
    %c0_i32 = arith.constant 0 : i32
    %c0_i32_0 = arith.constant 0 : i32
    %c0_i32_1 = arith.constant 0 : i32
    return %c0_i32, %c0_i32_0 : i32, i32
  }
  func.func @transform_7(%arg0: i32) -> (i32, i32) {
    %c0_i32 = arith.constant 0 : i32
    %c0_i32_0 = arith.constant 0 : i32
    %c0_i32_1 = arith.constant 0 : i32
    return %c0_i32, %c0_i32_0 : i32, i32
  }
  func.func @transform_8(%arg0: i32) -> (i32, i32) {
    %c0_i32 = arith.constant 0 : i32
    %c0_i32_0 = arith.constant 0 : i32
    %c0_i32_1 = arith.constant 0 : i32
    return %c0_i32, %c0_i32_0 : i32, i32
  }
  func.func @transform_9(%arg0: i32) -> (i32, i32) {
    %c0_i32 = arith.constant 0 : i32
    %c0_i32_0 = arith.constant 0 : i32
    %c0_i32_1 = arith.constant 0 : i32
    return %c0_i32, %c0_i32_0 : i32, i32
  }
  func.func @transform_10(%arg0: i32) -> (i32, i32) {
    %c0_i32 = arith.constant 0 : i32
    %c0_i32_0 = arith.constant 0 : i32
    %c0_i32_1 = arith.constant 0 : i32
    return %c0_i32, %c0_i32_0 : i32, i32
  }
  func.func @transform_11(%arg0: i32) -> (i32, i32) {
    %c0_i32 = arith.constant 0 : i32
    %c0_i32_0 = arith.constant 0 : i32
    %c0_i32_1 = arith.constant 0 : i32
    return %c0_i32, %c0_i32_0 : i32, i32
  }
  func.func @transform_12(%arg0: i32) -> (i32, i32) {
    %c0_i32 = arith.constant 0 : i32
    %c0_i32_0 = arith.constant 0 : i32
    %c0_i32_1 = arith.constant 0 : i32
    return %c0_i32, %c0_i32_0 : i32, i32
  }
  func.func @transform_13(%arg0: i32) -> (i32, i32) {
    %c0_i32 = arith.constant 0 : i32
    %c0_i32_0 = arith.constant 0 : i32
    %c0_i32_1 = arith.constant 0 : i32
    return %c0_i32, %c0_i32_0 : i32, i32
  }
  func.func @transform_14(%arg0: i32) -> (i32, i32) {
    %c0_i32 = arith.constant 0 : i32
    %c0_i32_0 = arith.constant 0 : i32
    %c0_i32_1 = arith.constant 0 : i32
    return %c0_i32, %c0_i32_0 : i32, i32
  }
  func.func @transform_15(%arg0: i32) -> (i32, i32) {
    %c0_i32 = arith.constant 0 : i32
    %c0_i32_0 = arith.constant 0 : i32
    return %arg0, %c0_i32 : i32, i32
  }
}

</mosaic_0001>

<llo_original>
// kernel: tpu_custom_call.1
$region0: #{tpu_custom_call.1}
  #allocation0 [shape = 'u32[]', space=smem, size = 0x4, offset = 0x4, fixed_abs, tag = 'smem constant byte address 0x4 - core index']
  #allocation1 [shape = 'u32[72,128]{1,0:T(1,128)}', space=vmem, size = 0x9000, scoped, tag = 'internal scratch']
  #allocation2 [shape = 'f32[48,64]{1,0:T(8,128)}', space=vmem, size = 0x6000, scoped, tag = 'scratch operand']
  #allocation3 [shape = 'f32[1,1]{1,0:T(1,128)S(1)}', space=vmem, size = 0x200, scoped, tag = 'scoped memory for tpu_custom_call.1']
  %s0 = inlined_call_operand.vmem [shape: f32[48,32], index: 0, kind: input, shape index: {}]
  %s1 = inlined_call_operand.hbm [shape: f32[32,64], index: 1, kind: input, shape index: {}]
  %s2 = inlined_call_operand.hbm [shape: f32[32,64], index: 2, kind: input, shape index: {}]
  %s3 = inlined_call_operand.hbm [shape: f32[32,64], index: 3, kind: input, shape index: {}]
  %s4 = inlined_call_operand.vmem [shape: f32[1,64], index: 4, kind: input, shape index: {}]
  %s5 = inlined_call_operand.vmem [shape: f32[64,64], index: 5, kind: input, shape index: {}]
  %s6 = inlined_call_operand.hbm [shape: f32[64,64], index: 6, kind: input, shape index: {}]
  %s7 = inlined_call_operand.hbm [shape: f32[64,64], index: 7, kind: input, shape index: {}]
  %s8 = inlined_call_operand.vmem [shape: f32[1,64], index: 8, kind: input, shape index: {}]
  %s9 = inlined_call_operand.hbm [shape: f32[64,64], index: 9, kind: input, shape index: {}]
  %s10 = inlined_call_operand.hbm [shape: f32[64,64], index: 10, kind: input, shape index: {}]
  %s11 = inlined_call_operand.hbm [shape: f32[64,64], index: 11, kind: input, shape index: {}]
  %s12 = inlined_call_operand.vmem [shape: f32[1,64], index: 12, kind: input, shape index: {}]
  %s13 = inlined_call_operand.vmem [shape: f32[1,64], index: 13, kind: input, shape index: {}]
  %s14 = inlined_call_operand.<no memory space> [shape: f32[1,1], index: 14, kind: input, shape index: {}]
  %s15 = inlined_call_operand.vmem [shape: f32[16,1], index: 15, kind: output, shape index: {}]
  %s16 = sld [smem:[#allocation0]]
  $region110: #{tpu_custom_call.1} parent=0
    _
  %s18 = ssub.s32 1, %s16
  %s19 = scalar_select 0, %s18, %s16
  %v20 = vstv %s14
  %21 = vst [vmem:[#allocation3] sm:$0x1] %v20
  $region1: #{tpu_custom_call.1} parent=0
    #allocation4 [shape = 'u8[16384]{0}', space=vmem, size = 0x4000, scoped, tag = 'input window, operand 1, single buffered']
    #allocation5 [shape = 's32[1]{0}', space=sflag, size = 0x4, scoped, tag = 'scoped memory for tpu_custom_call.1']
    #allocation6 [shape = 'u8[16384]{0}', space=vmem, size = 0x4000, scoped, tag = 'input window, operand 2, single buffered']
    #allocation7 [shape = 's32[1]{0}', space=sflag, size = 0x4, scoped, tag = 'scoped memory for tpu_custom_call.1']
    #allocation8 [shape = 'u8[16384]{0}', space=vmem, size = 0x4000, scoped, tag = 'input window, operand 3, single buffered']
    #allocation9 [shape = 'u8[32768]{0}', space=vmem, size = 0x8000, scoped, tag = 'input window, operand 6, single buffered']
    #allocation10 [shape = 's32[1]{0}', space=sflag, size = 0x4, scoped, tag = 'scoped memory for tpu_custom_call.1']
    #allocation11 [shape = 'u8[32768]{0}', space=vmem, size = 0x8000, scoped, tag = 'input window, operand 7, single buffered']
    #allocation12 [shape = 'u8[32768]{0}', space=vmem, size = 0x8000, scoped, tag = 'input window, operand 9, single buffered']
    #allocation13 [shape = 's32[1]{0}', space=sflag, size = 0x4, scoped, tag = 'scoped memory for tpu_custom_call.1']
    #allocation14 [shape = 'u8[32768]{0}', space=vmem, size = 0x8000, scoped, tag = 'input window, operand 10, single buffered']
    #allocation15 [shape = 'u8[32768]{0}', space=vmem, size = 0x8000, scoped, tag = 'input window, operand 11, single buffered']
    #allocation16 [shape = 's32[1]{0}', space=sflag, size = 0x4, scoped, tag = 'scoped memory for tpu_custom_call.1']
    %22 = vsyncpa [#allocation5], 0
    %23 = vsyncpa [#allocation7], 0
    %24 = vsyncpa [#allocation10], 0
    %25 = vsyncpa [#allocation13], 0
    %26 = vsyncpa [#allocation16], 0
    // Predicated region
    $region2: #{tpu_custom_call.1} parent=1 // pred_check
      _
    $region3: #{tpu_custom_call.1} parent=1 // pred_check_branch
      %28 = sbr.rel (0) target = $region5
    $region4: #{tpu_custom_call.1} parent=1 // pred_region
      _
    $region5: #{tpu_custom_call.1} parent=1 // pred_fallthru
      _
    // Predicated region
    $region6: #{tpu_custom_call.1} parent=1 // pred_check
      _
    $region7: #{tpu_custom_call.1} parent=1 // pred_check_branch
      %30 = sbr.rel (0) target = $region9
    $region8: #{tpu_custom_call.1} parent=1 // pred_region
      %32 = vsyncadd [#allocation5], 0
      %s33 = sshll.u32 %s1, 4
      %s34 = int_to_ptr.hbm [resolvable:$true] %s33
      %s35 = sshll.u32 [#allocation4], 4
      %s36 = int_to_ptr.vmem [resolvable:$true] %s35
      %41 = dma.hbm_to_vmem [thread:$0]  %s34, 512, %s36, [#allocation5], 128, 128, 8
    $region9: #{tpu_custom_call.1} parent=1 // pred_fallthru
      _
    // Predicated region
    $region10: #{tpu_custom_call.1} parent=1 // pred_check
      _
    $region11: #{tpu_custom_call.1} parent=1 // pred_check_branch
      %43 = sbr.rel (0) target = $region13
    $region12: #{tpu_custom_call.1} parent=1 // pred_region
      %45 = vsyncadd [#allocation7], 0
      %s46 = sshll.u32 %s2, 4
      %s47 = int_to_ptr.hbm [resolvable:$true] %s46
      %s48 = sshll.u32 [#allocation6], 4
      %s49 = int_to_ptr.vmem [resolvable:$true] %s48
      %54 = dma.hbm_to_vmem [thread:$0]  %s47, 512, %s49, [#allocation7], 128, 128, 8
    $region13: #{tpu_custom_call.1} parent=1 // pred_fallthru
      _
    // Predicated region
    $region14: #{tpu_custom_call.1} parent=1 // pred_check
      _
    $region15: #{tpu_custom_call.1} parent=1 // pred_check_branch
      %56 = sbr.rel (0) target = $region17
    $region16: #{tpu_custom_call.1} parent=1 // pred_region
      %58 = vsyncadd [#allocation7], 0
      %s59 = sshll.u32 %s3, 4
      %s60 = int_to_ptr.hbm [resolvable:$true] %s59
      %s61 = sshll.u32 [#allocation8], 4
      %s62 = int_to_ptr.vmem [resolvable:$true] %s61
      %67 = dma.hbm_to_vmem [thread:$0]  %s60, 512, %s62, [#allocation7], 128, 128, 8
    $region17: #{tpu_custom_call.1} parent=1 // pred_fallthru
      _
    // Predicated region
    $region18: #{tpu_custom_call.1} parent=1 // pred_check
      _
    $region19: #{tpu_custom_call.1} parent=1 // pred_check_branch
      %69 = sbr.rel (0) target = $region21
    $region20: #{tpu_custom_call.1} parent=1 // pred_region
      _
    $region21: #{tpu_custom_call.1} parent=1 // pred_fallthru
      _
    // Predicated region
    $region22: #{tpu_custom_call.1} parent=1 // pred_check
      _
    $region23: #{tpu_custom_call.1} parent=1 // pred_check_branch
      %71 = sbr.rel (0) target = $region25
    $region24: #{tpu_custom_call.1} parent=1 // pred_region
      _
    $region25: #{tpu_custom_call.1} parent=1 // pred_fallthru
      _
    // Predicated region
    $region26: #{tpu_custom_call.1} parent=1 // pred_check
      _
    $region27: #{tpu_custom_call.1} parent=1 // pred_check_branch
      %73 = sbr.rel (0) target = $region29
    $region28: #{tpu_custom_call.1} parent=1 // pred_region
      %75 = vsyncadd [#allocation10], 0
      %s76 = sshll.u32 %s6, 4
      %s77 = int_to_ptr.hbm [resolvable:$true] %s76
      %s78 = sshll.u32 [#allocation9], 4
      %s79 = int_to_ptr.vmem [resolvable:$true] %s78
      %84 = dma.hbm_to_vmem [thread:$0]  %s77, 1024, %s79, [#allocation10], 128, 128, 8
    $region29: #{tpu_custom_call.1} parent=1 // pred_fallthru
      _
    // Predicated region
    $region30: #{tpu_custom_call.1} parent=1 // pred_check
      _
    $region31: #{tpu_custom_call.1} parent=1 // pred_check_branch
      %86 = sbr.rel (0) target = $region33
    $region32: #{tpu_custom_call.1} parent=1 // pred_region
      %88 = vsyncadd [#allocation10], 0
      %s89 = sshll.u32 %s7, 4
      %s90 = int_to_ptr.hbm [resolvable:$true] %s89
      %s91 = sshll.u32 [#allocation11], 4
      %s92 = int_to_ptr.vmem [resolvable:$true] %s91
      %97 = dma.hbm_to_vmem [thread:$0]  %s90, 1024, %s92, [#allocation10], 128, 128, 8
    $region33: #{tpu_custom_call.1} parent=1 // pred_fallthru
      _
    // Predicated region
    $region34: #{tpu_custom_call.1} parent=1 // pred_check
      _
    $region35: #{tpu_custom_call.1} parent=1 // pred_check_branch
      %99 = sbr.rel (0) target = $region37
    $region36: #{tpu_custom_call.1} parent=1 // pred_region
      _
    $region37: #{tpu_custom_call.1} parent=1 // pred_fallthru
      _
    // Predicated region
    $region38: #{tpu_custom_call.1} parent=1 // pred_check
      _
    $region39: #{tpu_custom_call.1} parent=1 // pred_check_branch
      %101 = sbr.rel (0) target = $region41
    $region40: #{tpu_custom_call.1} parent=1 // pred_region
      %103 = vsyncadd [#allocation13], 0
      %s104 = sshll.u32 %s9, 4
      %s105 = int_to_ptr.hbm [resolvable:$true] %s104
      %s106 = sshll.u32 [#allocation12], 4
      %s107 = int_to_ptr.vmem [resolvable:$true] %s106
      %112 = dma.hbm_to_vmem [thread:$0]  %s105, 1024, %s107, [#allocation13], 128, 128, 8
    $region41: #{tpu_custom_call.1} parent=1 // pred_fallthru
      _
    // Predicated region
    $region42: #{tpu_custom_call.1} parent=1 // pred_check
      _
    $region43: #{tpu_custom_call.1} parent=1 // pred_check_branch
      %114 = sbr.rel (0) target = $region45
    $region44: #{tpu_custom_call.1} parent=1 // pred_region
      %116 = vsyncadd [#allocation13], 0
      %s117 = sshll.u32 %s10, 4
      %s118 = int_to_ptr.hbm [resolvable:$true] %s117
      %s119 = sshll.u32 [#allocation14], 4
      %s120 = int_to_ptr.vmem [resolvable:$true] %s119
      %125 = dma.hbm_to_vmem [thread:$0]  %s118, 1024, %s120, [#allocation13], 128, 128, 8
    $region45: #{tpu_custom_call.1} parent=1 // pred_fallthru
      _
    // Predicated region
    $region46: #{tpu_custom_call.1} parent=1 // pred_check
      _
    $region47: #{tpu_custom_call.1} parent=1 // pred_check_branch
      %127 = sbr.rel (0) target = $region49
    $region48: #{tpu_custom_call.1} parent=1 // pred_region
      %129 = vsyncadd [#allocation16], 0
      %s130 = sshll.u32 %s11, 4
      %s131 = int_to_ptr.hbm [resolvable:$true] %s130
      %s132 = sshll.u32 [#allocation15], 4
      %s133 = int_to_ptr.vmem [resolvable:$true] %s132
      %138 = dma.hbm_to_vmem [thread:$0]  %s131, 1024, %s133, [#allocation16], 128, 128, 8
    $region49: #{tpu_custom_call.1} parent=1 // pred_fallthru
      _
    // Predicated region
    $region50: #{tpu_custom_call.1} parent=1 // pred_check
      _
    $region51: #{tpu_custom_call.1} parent=1 // pred_check_branch
      %140 = sbr.rel (0) target = $region53
    $region52: #{tpu_custom_call.1} parent=1 // pred_region
      _
    $region53: #{tpu_custom_call.1} parent=1 // pred_fallthru
      _
    // Predicated region
    $region54: #{tpu_custom_call.1} parent=1 // pred_check
      _
    $region55: #{tpu_custom_call.1} parent=1 // pred_check_branch
      %142 = sbr.rel (0) target = $region57
    $region56: #{tpu_custom_call.1} parent=1 // pred_region
      _
    $region57: #{tpu_custom_call.1} parent=1 // pred_fallthru
      _
    // Predicated region
    $region58: #{tpu_custom_call.1} parent=1 // pred_check
      _
    $region59: #{tpu_custom_call.1} parent=1 // pred_check_branch
      %144 = sbr.rel (0) target = $region61
    $region60: #{tpu_custom_call.1} parent=1 // pred_region
      _
    $region61: #{tpu_custom_call.1} parent=1 // pred_fallthru
      _
    // Predicated region
    $region62: #{tpu_custom_call.1} parent=1 // pred_check
      _
    $region63: #{tpu_custom_call.1} parent=1 // pred_check_branch
      %146 = sbr.rel (0) target = $region65
    $region64: #{tpu_custom_call.1} parent=1 // pred_region
      %148 = dma.done [#allocation5], 512
    $region65: #{tpu_custom_call.1} parent=1 // pred_fallthru
      _
    // Predicated region
    $region66: #{tpu_custom_call.1} parent=1 // pred_check
      _
    $region67: #{tpu_custom_call.1} parent=1 // pred_check_branch
      %150 = sbr.rel (0) target = $region69
    $region68: #{tpu_custom_call.1} parent=1 // pred_region
      %152 = dma.done [#allocation7], 512
    $region69: #{tpu_custom_call.1} parent=1 // pred_fallthru
      _
    // Predicated region
    $region70: #{tpu_custom_call.1} parent=1 // pred_check
      _
    $region71: #{tpu_custom_call.1} parent=1 // pred_check_branch
      %154 = sbr.rel (0) target = $region73
    $region72: #{tpu_custom_call.1} parent=1 // pred_region
      %156 = dma.done [#allocation7], 512
    $region73: #{tpu_custom_call.1} parent=1 // pred_fallthru
      _
    // Predicated region
    $region74: #{tpu_custom_call.1} parent=1 // pred_check
      _
    $region75: #{tpu_custom_call.1} parent=1 // pred_check_branch
      %158 = sbr.rel (0) target = $region77
    $region76: #{tpu_custom_call.1} parent=1 // pred_region
      %160 = dma.done [#allocation10], 1024
    $region77: #{tpu_custom_call.1} parent=1 // pred_fallthru
      _
    // Predicated region
    $region78: #{tpu_custom_call.1} parent=1 // pred_check
      _
    $region79: #{tpu_custom_call.1} parent=1 // pred_check_branch
      %162 = sbr.rel (0) target = $region81
    $region80: #{tpu_custom_call.1} parent=1 // pred_region
      %164 = dma.done [#allocation10], 1024
    $region81: #{tpu_custom_call.1} parent=1 // pred_fallthru
      _
    // Predicated region
    $region82: #{tpu_custom_call.1} parent=1 // pred_check
      _
    $region83: #{tpu_custom_call.1} parent=1 // pred_check_branch
      %166 = sbr.rel (0) target = $region85
    $region84: #{tpu_custom_call.1} parent=1 // pred_region
      %168 = dma.done [#allocation13], 1024
    $region85: #{tpu_custom_call.1} parent=1 // pred_fallthru
      _
    // Predicated region
    $region86: #{tpu_custom_call.1} parent=1 // pred_check
      _
    $region87: #{tpu_custom_call.1} parent=1 // pred_check_branch
      %170 = sbr.rel (0) target = $region89
    $region88: #{tpu_custom_call.1} parent=1 // pred_region
      %172 = dma.done [#allocation13], 1024
    $region89: #{tpu_custom_call.1} parent=1 // pred_fallthru
      _
    // Predicated region
    $region90: #{tpu_custom_call.1} parent=1 // pred_check
      _
    $region91: #{tpu_custom_call.1} parent=1 // pred_check_branch
      %174 = sbr.rel (0) target = $region93
    $region92: #{tpu_custom_call.1} parent=1 // pred_region
      %176 = dma.done [#allocation16], 1024
    $region93: #{tpu_custom_call.1} parent=1 // pred_fallthru
      _
    %s177 = smul.u32 0, 16
    %p178 = scmp.eq.s32.totalorder 0, 0
    %s179 = sadd.s32 0, 1
    %s180 = smul.u32 %s179, 16
    %s181 = sadd.s32 %s180, 8
    %p182 = scmp.gt.s32.totalorder %s181, 16
    %p183 = por %p178, %p182
    %s184 = sadd.s32 %s177, 7
    %s185 = scalar_lea.vmem %s0, %s184
    %v186 = vld [vmem:[%s185] sm:$0xff]
    %v187 = vld [vmem:[%s185 + $0x8] sm:$0xff]
    %v188 = vld [vmem:[%s185 + $0x10] sm:$0xff]
    %v189 = vld [vmem:[%s185 + $0x18] sm:$0xff]
    %s190 = sadd.s32 %s177, 8
    %s191 = scalar_lea.vmem %s0, %s190
    %v192 = vld [vmem:[%s191] sm:$0xff]
    %v193 = vld [vmem:[%s191 + $0x8] sm:$0xff]
    %v194 = vld [vmem:[%s191 + $0x10] sm:$0xff]
    %v195 = vld [vmem:[%s191 + $0x18] sm:$0xff]
    %s196 = sadd.s32 %s177, 9
    %s197 = scalar_lea.vmem %s0, %s196
    %v198 = vld [vmem:[%s197] sm:$0xff]
    %v199 = vld [vmem:[%s197 + $0x8] sm:$0xff]
    %v200 = vld [vmem:[%s197 + $0x10] sm:$0xff]
    %v201 = vld [vmem:[%s197 + $0x18] sm:$0xff]
    %v202 = vld [vmem:[#allocation4] sm:$0xff]
    %v203 = vld [vmem:[#allocation4 + $0x8] sm:$0xff]
    %v204 = vld [vmem:[#allocation4 + $0x10] sm:$0xff]
    %v205 = vld [vmem:[#allocation4 + $0x18] sm:$0xff]
    %v206 = vld [vmem:[#allocation6] sm:$0xff]
    %v207 = vld [vmem:[#allocation6 + $0x8] sm:$0xff]
    %v208 = vld [vmem:[#allocation6 + $0x10] sm:$0xff]
    %v209 = vld [vmem:[#allocation6 + $0x18] sm:$0xff]
    %vm210 = vcmask 261120
    %v212 = vsel %vm210, %v192, 0
    %v215 = vsel %vm210, %v193, 0
    %v218 = vsel %vm210, %v194, 0
    %v221 = vsel %vm210, %v195, 0
    %223 = vmatpush.msra.mxu0 0.0
    %224 = vmatpush.msra.mxu0 0.0
    %225 = vmatpush.msra.mxu0 0.0
    %226 = vmatpush.msra.mxu0 0.0
    %227 = vmatpush.msra.mxu0 0.0
    %228 = vmatpush.msra.mxu0 0.0
    %229 = vmatpush.msra.mxu0 0.0
    %230 = vmatpush.msra.mxu0 0.0
    %231 = vmatpush.msra.mxu0 0.0
    %232 = vmatpush.msra.mxu0 0.0
    %233 = vmatpush.msra.mxu0 0.0
    %234 = vmatpush.msra.mxu0 0.0
    %235 = vmatpush.msra.mxu0 %v209
    %236 = vmatpush.msra.mxu0 %v208
    %237 = vmatpush.msra.mxu0 %v207
    %238 = vmatpush.msra.mxu0 %v206
    %239 = vmatmul.f32.gmra.mxu0 %v212
    %v240 = vpop.f32.mrf.mxu0
    %v241 = vadd.f32 0.0, %v240
    %242 = vmatmul.f32.gmra.mxu0 %v215
    %v243 = vpop.f32.mrf.mxu0
    %v244 = vadd.f32 0.0, %v243
    %245 = vmatmul.f32.gmra.mxu0 %v218
    %v246 = vpop.f32.mrf.mxu0
    %v247 = vadd.f32 0.0, %v246
    %248 = vmatmul.f32.gmra.mxu0 %v221
    %v249 = vpop.f32.mrf.mxu0
    %v250 = vadd.f32 0.0, %v249
    %251 = vdwg.mxu0
    %v253 = vsel %vm210, %v186, 0
    %v256 = vsel %vm210, %v187, 0
    %v259 = vsel %vm210, %v188, 0
    %v262 = vsel %vm210, %v189, 0
    %264 = vmatpush.msra.mxu0 0.0
    %265 = vmatpush.msra.mxu0 0.0
    %266 = vmatpush.msra.mxu0 0.0
    %267 = vmatpush.msra.mxu0 0.0
    %268 = vmatpush.msra.mxu0 0.0
    %269 = vmatpush.msra.mxu0 0.0
    %270 = vmatpush.msra.mxu0 0.0
    %271 = vmatpush.msra.mxu0 0.0
    %272 = vmatpush.msra.mxu0 0.0
    %273 = vmatpush.msra.mxu0 0.0
    %274 = vmatpush.msra.mxu0 0.0
    %275 = vmatpush.msra.mxu0 0.0
    %276 = vmatpush.msra.mxu0 %v205
    %277 = vmatpush.msra.mxu0 %v204
    %278 = vmatpush.msra.mxu0 %v203
    %279 = vmatpush.msra.mxu0 %v202
    %280 = vmatmul.f32.gmra.mxu0 %v253
    %v281 = vpop.f32.mrf.mxu0
    %v282 = vadd.f32 %v241, %v281
    %283 = vmatmul.f32.gmra.mxu0 %v256
    %v284 = vpop.f32.mrf.mxu0
    %v285 = vadd.f32 %v244, %v284
    %286 = vmatmul.f32.gmra.mxu0 %v259
    %v287 = vpop.f32.mrf.mxu0
    %v288 = vadd.f32 %v247, %v287
    %289 = vmatmul.f32.gmra.mxu0 %v262
    %v290 = vpop.f32.mrf.mxu0
    %v291 = vadd.f32 %v250, %v290
    %292 = vdwg.mxu0
    %v293 = vld [vmem:[#allocation8] sm:$0xff]
    %v294 = vld [vmem:[#allocation8 + $0x8] sm:$0xff]
    %v295 = vld [vmem:[#allocation8 + $0x10] sm:$0xff]
    %v296 = vld [vmem:[#allocation8 + $0x18] sm:$0xff]
    %v298 = vsel %vm210, %v198, 0
    %v301 = vsel %vm210, %v199, 0
    %v304 = vsel %vm210, %v200, 0
    %v307 = vsel %vm210, %v201, 0
    %309 = vmatpush.msra.mxu0 0.0
    %310 = vmatpush.msra.mxu0 0.0
    %311 = vmatpush.msra.mxu0 0.0
    %312 = vmatpush.msra.mxu0 0.0
    %313 = vmatpush.msra.mxu0 0.0
    %314 = vmatpush.msra.mxu0 0.0
    %315 = vmatpush.msra.mxu0 0.0
    %316 = vmatpush.msra.mxu0 0.0
    %317 = vmatpush.msra.mxu0 0.0
    %318 = vmatpush.msra.mxu0 0.0
    %319 = vmatpush.msra.mxu0 0.0
    %320 = vmatpush.msra.mxu0 0.0
    %321 = vmatpush.msra.mxu0 %v296
    %322 = vmatpush.msra.mxu0 %v295
    %323 = vmatpush.msra.mxu0 %v294
    %324 = vmatpush.msra.mxu0 %v293
    %325 = vmatmul.f32.gmra.mxu0 %v298
    %v326 = vpop.f32.mrf.mxu0
    %v327 = vadd.f32 0.0, %v326
    %328 = vmatmul.f32.gmra.mxu0 %v301
    %v329 = vpop.f32.mrf.mxu0
    %v330 = vadd.f32 0.0, %v329
    %331 = vmatmul.f32.gmra.mxu0 %v304
    %v332 = vpop.f32.mrf.mxu0
    %v333 = vadd.f32 0.0, %v332
    %334 = vmatmul.f32.gmra.mxu0 %v307
    %v335 = vpop.f32.mrf.mxu0
    %v336 = vadd.f32 0.0, %v335
    %337 = vdwg.mxu0
    %v338 = vadd.f32 %v282, %v327
    %v339 = vadd.f32 %v285, %v330
    %v340 = vadd.f32 %v288, %v333
    %v341 = vadd.f32 %v291, %v336
    %v342 = vld [vmem:[%s4] sm:$0x1]
    %v344 = vperm.slane %v342, 0
    %v346 = vadd.f32 %v338, %v344
    %v347 = vadd.f32 %v339, %v344
    %v348 = vadd.f32 %v340, %v344
    %v349 = vadd.f32 %v341, %v344
    %v350 = vmax.f32 %v346, 0.0
    %v351 = vmax.f32 %v347, 0.0
    %v352 = vmax.f32 %v348, 0.0
    %v353 = vmax.f32 %v349, 0.0
    %vm354 = vcmask 523264
    %355 = vst.msk [vmem:[#allocation2 + $0x8] sm:$0xff] %vm354, %v350
    %356 = vst.msk [vmem:[#allocation2 + $0x10] sm:$0xff] %vm354, %v351
    %357 = vst.msk [vmem:[#allocation2 + $0x18] sm:$0xff] %vm354, %v352
    %358 = vst.msk [vmem:[#allocation2 + $0x20] sm:$0xff] %vm354, %v353
    // Predicated region
    $region94: #{tpu_custom_call.1} parent=1 // pred_check
      %p359 = pneg %p183
    $region95: #{tpu_custom_call.1} parent=1 // pred_check_branch
      %361 = sbr.rel (%p359) target = $region97
    $region96: #{tpu_custom_call.1} parent=1 // pred_region
      %v362 = vlaneseq
      %v363 = vshrl.u32 %v362, 7
      %v364 = vadd.s32 %v363, 8
      %v365 = vadd.s32 %v363, 16
      %v366 = vadd.s32 %v363, 24
      %s367 = ssub.s32 %s177, 8
      %v368 = vstv %s367
      %v369 = vadd.s32 %v363, %v368
      %v370 = vadd.s32 %v364, %v368
      %v371 = vadd.s32 %v365, %v368
      %v372 = vadd.s32 %v366, %v368
      %vm373 = vcmp.ge.s32.totalorder %v369, 0
      %vm374 = vcmp.ge.s32.totalorder %v370, 0
      %vm375 = vcmp.ge.s32.totalorder %v371, 0
      %vm376 = vcmp.ge.s32.totalorder %v372, 0
      %vm377 = vcmp.lt.s32.totalorder %v369, 16
      %vm378 = vcmp.lt.s32.totalorder %v370, 16
      %vm379 = vcmp.lt.s32.totalorder %v371, 16
      %vm380 = vcmp.lt.s32.totalorder %v372, 16
      %vm381 = vmand %vm373, %vm377
      %vm382 = vmand %vm374, %vm378
      %vm383 = vmand %vm375, %vm379
      %vm384 = vmand %vm376, %vm380
      %v385 = vsel %vm381, %v350, 0.0
      %v386 = vsel %vm382, %v351, 0.0
      %v387 = vsel %vm383, %v352, 0.0
      %v388 = vsel %vm384, %v353, 0.0
      %389 = vst.msk [vmem:[#allocation2 + $0x8] sm:$0xff] %vm354, %v385
      %390 = vst.msk [vmem:[#allocation2 + $0x10] sm:$0xff] %vm354, %v386
      %391 = vst.msk [vmem:[#allocation2 + $0x18] sm:$0xff] %vm354, %v387
      %392 = vst.msk [vmem:[#allocation2 + $0x20] sm:$0xff] %vm354, %v388
    $region97: #{tpu_custom_call.1} parent=1 // pred_fallthru
      _
    %v393 = vld [vmem:[#allocation2 + $0x7] sm:$0xff]
    %v394 = vld [vmem:[#allocation2 + $0xf] sm:$0xff]
    %v395 = vld [vmem:[#allocation2 + $0x17] sm:$0xff]
    %v396 = vld [vmem:[#allocation2 + $0x1f] sm:$0xff]
    %v397 = vld [vmem:[#allocation2 + $0x8] sm:$0xff]
    %v398 = vld [vmem:[#allocation2 + $0x10] sm:$0xff]
    %v399 = vld [vmem:[#allocation2 + $0x18] sm:$0xff]
    %v400 = vld [vmem:[#allocation2 + $0x20] sm:$0xff]
    %v401 = vld [vmem:[#allocation2 + $0x9] sm:$0xff]
    %v402 = vld [vmem:[#allocation2 + $0x11] sm:$0xff]
    %v403 = vld [vmem:[#allocation2 + $0x19] sm:$0xff]
    %v404 = vld [vmem:[#allocation2 + $0x21] sm:$0xff]
    %v405 = vld [vmem:[%s5] sm:$0xff]
    %v406 = vld [vmem:[%s5 + $0x8] sm:$0xff]
    %v407 = vld [vmem:[%s5 + $0x10] sm:$0xff]
    %v408 = vld [vmem:[%s5 + $0x18] sm:$0xff]
    %v409 = vld [vmem:[%s5 + $0x20] sm:$0xff]
    %v410 = vld [vmem:[%s5 + $0x28] sm:$0xff]
    %v411 = vld [vmem:[%s5 + $0x30] sm:$0xff]
    %v412 = vld [vmem:[%s5 + $0x38] sm:$0xff]
    %v413 = vld [vmem:[#allocation9] sm:$0xff]
    %v414 = vld [vmem:[#allocation9 + $0x8] sm:$0xff]
    %v415 = vld [vmem:[#allocation9 + $0x10] sm:$0xff]
    %v416 = vld [vmem:[#allocation9 + $0x18] sm:$0xff]
    %v417 = vld [vmem:[#allocation9 + $0x20] sm:$0xff]
    %v418 = vld [vmem:[#allocation9 + $0x28] sm:$0xff]
    %v419 = vld [vmem:[#allocation9 + $0x30] sm:$0xff]
    %v420 = vld [vmem:[#allocation9 + $0x38] sm:$0xff]
    %v422 = vsel %vm354, %v397, 0
    %v425 = vsel %vm354, %v398, 0
    %v428 = vsel %vm354, %v399, 0
    %v431 = vsel %vm354, %v400, 0
    %433 = vmatpush.msra.mxu0 0.0
    %434 = vmatpush.msra.mxu0 0.0
    %435 = vmatpush.msra.mxu0 0.0
    %436 = vmatpush.msra.mxu0 0.0
    %437 = vmatpush.msra.mxu0 0.0
    %438 = vmatpush.msra.mxu0 0.0
    %439 = vmatpush.msra.mxu0 0.0
    %440 = vmatpush.msra.mxu0 0.0
    %441 = vmatpush.msra.mxu0 %v420
    %442 = vmatpush.msra.mxu0 %v419
    %443 = vmatpush.msra.mxu0 %v418
    %444 = vmatpush.msra.mxu0 %v417
    %445 = vmatpush.msra.mxu0 %v416
    %446 = vmatpush.msra.mxu0 %v415
    %447 = vmatpush.msra.mxu0 %v414
    %448 = vmatpush.msra.mxu0 %v413
    %449 = vmatmul.f32.gmra.mxu0 %v422
    %v450 = vpop.f32.mrf.mxu0
    %v451 = vadd.f32 0.0, %v450
    %452 = vmatmul.f32.gmra.mxu0 %v425
    %v453 = vpop.f32.mrf.mxu0
    %v454 = vadd.f32 0.0, %v453
    %455 = vmatmul.f32.gmra.mxu0 %v428
    %v456 = vpop.f32.mrf.mxu0
    %v457 = vadd.f32 0.0, %v456
    %458 = vmatmul.f32.gmra.mxu0 %v431
    %v459 = vpop.f32.mrf.mxu0
    %v460 = vadd.f32 0.0, %v459
    %461 = vdwg.mxu0
    %v463 = vsel %vm354, %v393, 0
    %v466 = vsel %vm354, %v394, 0
    %v469 = vsel %vm354, %v395, 0
    %v472 = vsel %vm354, %v396, 0
    %474 = vmatpush.msra.mxu0 0.0
    %475 = vmatpush.msra.mxu0 0.0
    %476 = vmatpush.msra.mxu0 0.0
    %477 = vmatpush.msra.mxu0 0.0
    %478 = vmatpush.msra.mxu0 0.0
    %479 = vmatpush.msra.mxu0 0.0
    %480 = vmatpush.msra.mxu0 0.0
    %481 = vmatpush.msra.mxu0 0.0
    %482 = vmatpush.msra.mxu0 %v412
    %483 = vmatpush.msra.mxu0 %v411
    %484 = vmatpush.msra.mxu0 %v410
    %485 = vmatpush.msra.mxu0 %v409
    %486 = vmatpush.msra.mxu0 %v408
    %487 = vmatpush.msra.mxu0 %v407
    %488 = vmatpush.msra.mxu0 %v406
    %489 = vmatpush.msra.mxu0 %v405
    %490 = vmatmul.f32.gmra.mxu0 %v463
    %v491 = vpop.f32.mrf.mxu0
    %v492 = vadd.f32 %v451, %v491
    %493 = vmatmul.f32.gmra.mxu0 %v466
    %v494 = vpop.f32.mrf.mxu0
    %v495 = vadd.f32 %v454, %v494
    %496 = vmatmul.f32.gmra.mxu0 %v469
    %v497 = vpop.f32.mrf.mxu0
    %v498 = vadd.f32 %v457, %v497
    %499 = vmatmul.f32.gmra.mxu0 %v472
    %v500 = vpop.f32.mrf.mxu0
    %v501 = vadd.f32 %v460, %v500
    %502 = vdwg.mxu0
    %v503 = vld [vmem:[#allocation11] sm:$0xff]
    %v504 = vld [vmem:[#allocation11 + $0x8] sm:$0xff]
    %v505 = vld [vmem:[#allocation11 + $0x10] sm:$0xff]
    %v506 = vld [vmem:[#allocation11 + $0x18] sm:$0xff]
    %v507 = vld [vmem:[#allocation11 + $0x20] sm:$0xff]
    %v508 = vld [vmem:[#allocation11 + $0x28] sm:$0xff]
    %v509 = vld [vmem:[#allocation11 + $0x30] sm:$0xff]
    %v510 = vld [vmem:[#allocation11 + $0x38] sm:$0xff]
    %v512 = vsel %vm354, %v401, 0
    %v515 = vsel %vm354, %v402, 0
    %v518 = vsel %vm354, %v403, 0
    %v521 = vsel %vm354, %v404, 0
    %523 = vmatpush.msra.mxu0 0.0
    %524 = vmatpush.msra.mxu0 0.0
    %525 = vmatpush.msra.mxu0 0.0
    %526 = vmatpush.msra.mxu0 0.0
    %527 = vmatpush.msra.mxu0 0.0
    %528 = vmatpush.msra.mxu0 0.0
    %529 = vmatpush.msra.mxu0 0.0
    %530 = vmatpush.msra.mxu0 0.0
    %531 = vmatpush.msra.mxu0 %v510
    %532 = vmatpush.msra.mxu0 %v509
    %533 = vmatpush.msra.mxu0 %v508
    %534 = vmatpush.msra.mxu0 %v507
    %535 = vmatpush.msra.mxu0 %v506
    %536 = vmatpush.msra.mxu0 %v505
    %537 = vmatpush.msra.mxu0 %v504
    %538 = vmatpush.msra.mxu0 %v503
    %539 = vmatmul.f32.gmra.mxu0 %v512
    %v540 = vpop.f32.mrf.mxu0
    %v541 = vadd.f32 0.0, %v540
    %542 = vmatmul.f32.gmra.mxu0 %v515
    %v543 = vpop.f32.mrf.mxu0
    %v544 = vadd.f32 0.0, %v543
    %545 = vmatmul.f32.gmra.mxu0 %v518
    %v546 = vpop.f32.mrf.mxu0
    %v547 = vadd.f32 0.0, %v546
    %548 = vmatmul.f32.gmra.mxu0 %v521
    %v549 = vpop.f32.mrf.mxu0
    %v550 = vadd.f32 0.0, %v549
    %551 = vdwg.mxu0
    %v552 = vadd.f32 %v492, %v541
    %v553 = vadd.f32 %v495, %v544
    %v554 = vadd.f32 %v498, %v547
    %v555 = vadd.f32 %v501, %v550
    %v556 = vld [vmem:[%s8] sm:$0x1]
    %v558 = vperm.slane %v556, 0
    %v560 = vadd.f32 %v552, %v558
    %v561 = vadd.f32 %v553, %v558
    %v562 = vadd.f32 %v554, %v558
    %v563 = vadd.f32 %v555, %v558
    %v564 = vmax.f32 %v560, 0.0
    %v565 = vmax.f32 %v561, 0.0
    %v566 = vmax.f32 %v562, 0.0
    %v567 = vmax.f32 %v563, 0.0
    %568 = vst.msk [vmem:[#allocation2 + $0x8] sm:$0xff] %vm354, %v564
    %569 = vst.msk [vmem:[#allocation2 + $0x10] sm:$0xff] %vm354, %v565
    %570 = vst.msk [vmem:[#allocation2 + $0x18] sm:$0xff] %vm354, %v566
    %571 = vst.msk [vmem:[#allocation2 + $0x20] sm:$0xff] %vm354, %v567
    // Predicated region
    $region98: #{tpu_custom_call.1} parent=1 // pred_check
      %p572 = pneg %p183
    $region99: #{tpu_custom_call.1} parent=1 // pred_check_branch
      %574 = sbr.rel (%p572) target = $region101
    $region100: #{tpu_custom_call.1} parent=1 // pred_region
      %v575 = vlaneseq
      %v576 = vshrl.u32 %v575, 7
      %v577 = vadd.s32 %v576, 8
      %v578 = vadd.s32 %v576, 16
      %v579 = vadd.s32 %v576, 24
      %s580 = ssub.s32 %s177, 8
      %v581 = vstv %s580
      %v582 = vadd.s32 %v576, %v581
      %v583 = vadd.s32 %v577, %v581
      %v584 = vadd.s32 %v578, %v581
      %v585 = vadd.s32 %v579, %v581
      %vm586 = vcmp.ge.s32.totalorder %v582, 0
      %vm587 = vcmp.ge.s32.totalorder %v583, 0
      %vm588 = vcmp.ge.s32.totalorder %v584, 0
      %vm589 = vcmp.ge.s32.totalorder %v585, 0
      %vm590 = vcmp.lt.s32.totalorder %v582, 16
      %vm591 = vcmp.lt.s32.totalorder %v583, 16
      %vm592 = vcmp.lt.s32.totalorder %v584, 16
      %vm593 = vcmp.lt.s32.totalorder %v585, 16
      %vm594 = vmand %vm586, %vm590
      %vm595 = vmand %vm587, %vm591
      %vm596 = vmand %vm588, %vm592
      %vm597 = vmand %vm589, %vm593
      %v598 = vsel %vm594, %v564, 0.0
      %v599 = vsel %vm595, %v565, 0.0
      %v600 = vsel %vm596, %v566, 0.0
      %v601 = vsel %vm597, %v567, 0.0
      %602 = vst.msk [vmem:[#allocation2 + $0x8] sm:$0xff] %vm354, %v598
      %603 = vst.msk [vmem:[#allocation2 + $0x10] sm:$0xff] %vm354, %v599
      %604 = vst.msk [vmem:[#allocation2 + $0x18] sm:$0xff] %vm354, %v600
      %605 = vst.msk [vmem:[#allocation2 + $0x20] sm:$0xff] %vm354, %v601
    $region101: #{tpu_custom_call.1} parent=1 // pred_fallthru
      _
    %v606 = vld [vmem:[#allocation2 + $0x7] sm:$0xff]
    %v607 = vld [vmem:[#allocation2 + $0xf] sm:$0xff]
    %v608 = vld [vmem:[#allocation2 + $0x17] sm:$0xff]
    %v609 = vld [vmem:[#allocation2 + $0x1f] sm:$0xff]
    %v610 = vld [vmem:[#allocation2 + $0x8] sm:$0xff]
    %v611 = vld [vmem:[#allocation2 + $0x10] sm:$0xff]
    %v612 = vld [vmem:[#allocation2 + $0x18] sm:$0xff]
    %v613 = vld [vmem:[#allocation2 + $0x20] sm:$0xff]
    %v614 = vld [vmem:[#allocation2 + $0x9] sm:$0xff]
    %v615 = vld [vmem:[#allocation2 + $0x11] sm:$0xff]
    %v616 = vld [vmem:[#allocation2 + $0x19] sm:$0xff]
    %v617 = vld [vmem:[#allocation2 + $0x21] sm:$0xff]
    %v618 = vld [vmem:[#allocation12] sm:$0xff]
    %v619 = vld [vmem:[#allocation12 + $0x8] sm:$0xff]
    %v620 = vld [vmem:[#allocation12 + $0x10] sm:$0xff]
    %v621 = vld [vmem:[#allocation12 + $0x18] sm:$0xff]
    %v622 = vld [vmem:[#allocation12 + $0x20] sm:$0xff]
    %v623 = vld [vmem:[#allocation12 + $0x28] sm:$0xff]
    %v624 = vld [vmem:[#allocation12 + $0x30] sm:$0xff]
    %v625 = vld [vmem:[#allocation12 + $0x38] sm:$0xff]
    %v626 = vld [vmem:[#allocation14] sm:$0xff]
    %v627 = vld [vmem:[#allocation14 + $0x8] sm:$0xff]
    %v628 = vld [vmem:[#allocation14 + $0x10] sm:$0xff]
    %v629 = vld [vmem:[#allocation14 + $0x18] sm:$0xff]
    %v630 = vld [vmem:[#allocation14 + $0x20] sm:$0xff]
    %v631 = vld [vmem:[#allocation14 + $0x28] sm:$0xff]
    %v632 = vld [vmem:[#allocation14 + $0x30] sm:$0xff]
    %v633 = vld [vmem:[#allocation14 + $0x38] sm:$0xff]
    %v635 = vsel %vm354, %v610, 0
    %v638 = vsel %vm354, %v611, 0
    %v641 = vsel %vm354, %v612, 0
    %v644 = vsel %vm354, %v613, 0
    %646 = vmatpush.msra.mxu0 0.0
    %647 = vmatpush.msra.mxu0 0.0
    %648 = vmatpush.msra.mxu0 0.0
    %649 = vmatpush.msra.mxu0 0.0
    %650 = vmatpush.msra.mxu0 0.0
    %651 = vmatpush.msra.mxu0 0.0
    %652 = vmatpush.msra.mxu0 0.0
    %653 = vmatpush.msra.mxu0 0.0
    %654 = vmatpush.msra.mxu0 %v633
    %655 = vmatpush.msra.mxu0 %v632
    %656 = vmatpush.msra.mxu0 %v631
    %657 = vmatpush.msra.mxu0 %v630
    %658 = vmatpush.msra.mxu0 %v629
    %659 = vmatpush.msra.mxu0 %v628
    %660 = vmatpush.msra.mxu0 %v627
    %661 = vmatpush.msra.mxu0 %v626
    %662 = vmatmul.f32.gmra.mxu0 %v635
    %v663 = vpop.f32.mrf.mxu0
    %664 = vmatmul.f32.gmra.mxu0 %v638
    %v665 = vpop.f32.mrf.mxu0
    %v666 = vadd.f32 0.0, %v665
    %667 = vmatmul.f32.gmra.mxu0 %v641
    %v668 = vpop.f32.mrf.mxu0
    %v669 = vadd.f32 0.0, %v668
    %670 = vmatmul.f32.gmra.mxu0 %v644
    %v671 = vpop.f32.mrf.mxu0
    %672 = vdwg.mxu0
    %v674 = vsel %vm354, %v606, 0
    %v677 = vsel %vm354, %v607, 0
    %v680 = vsel %vm354, %v608, 0
    %v683 = vsel %vm354, %v609, 0
    %685 = vmatpush.msra.mxu0 0.0
    %686 = vmatpush.msra.mxu0 0.0
    %687 = vmatpush.msra.mxu0 0.0
    %688 = vmatpush.msra.mxu0 0.0
    %689 = vmatpush.msra.mxu0 0.0
    %690 = vmatpush.msra.mxu0 0.0
    %691 = vmatpush.msra.mxu0 0.0
    %692 = vmatpush.msra.mxu0 0.0
    %693 = vmatpush.msra.mxu0 %v625
    %694 = vmatpush.msra.mxu0 %v624
    %695 = vmatpush.msra.mxu0 %v623
    %696 = vmatpush.msra.mxu0 %v622
    %697 = vmatpush.msra.mxu0 %v621
    %698 = vmatpush.msra.mxu0 %v620
    %699 = vmatpush.msra.mxu0 %v619
    %700 = vmatpush.msra.mxu0 %v618
    %701 = vmatmul.f32.gmra.mxu0 %v674
    %v702 = vpop.f32.mrf.mxu0
    %703 = vmatmul.f32.gmra.mxu0 %v677
    %v704 = vpop.f32.mrf.mxu0
    %v705 = vadd.f32 %v666, %v704
    %706 = vmatmul.f32.gmra.mxu0 %v680
    %v707 = vpop.f32.mrf.mxu0
    %v708 = vadd.f32 %v669, %v707
    %709 = vmatmul.f32.gmra.mxu0 %v683
    %v710 = vpop.f32.mrf.mxu0
    %711 = vdwg.mxu0
    %v712 = vld [vmem:[#allocation15] sm:$0xff]
    %v713 = vld [vmem:[#allocation15 + $0x8] sm:$0xff]
    %v714 = vld [vmem:[#allocation15 + $0x10] sm:$0xff]
    %v715 = vld [vmem:[#allocation15 + $0x18] sm:$0xff]
    %v716 = vld [vmem:[#allocation15 + $0x20] sm:$0xff]
    %v717 = vld [vmem:[#allocation15 + $0x28] sm:$0xff]
    %v718 = vld [vmem:[#allocation15 + $0x30] sm:$0xff]
    %v719 = vld [vmem:[#allocation15 + $0x38] sm:$0xff]
    %v721 = vsel %vm354, %v614, 0
    %v724 = vsel %vm354, %v615, 0
    %v727 = vsel %vm354, %v616, 0
    %v730 = vsel %vm354, %v617, 0
    %732 = vmatpush.msra.mxu0 0.0
    %733 = vmatpush.msra.mxu0 0.0
    %734 = vmatpush.msra.mxu0 0.0
    %735 = vmatpush.msra.mxu0 0.0
    %736 = vmatpush.msra.mxu0 0.0
    %737 = vmatpush.msra.mxu0 0.0
    %738 = vmatpush.msra.mxu0 0.0
    %739 = vmatpush.msra.mxu0 0.0
    %740 = vmatpush.msra.mxu0 %v719
    %741 = vmatpush.msra.mxu0 %v718
    %742 = vmatpush.msra.mxu0 %v717
    %743 = vmatpush.msra.mxu0 %v716
    %744 = vmatpush.msra.mxu0 %v715
    %745 = vmatpush.msra.mxu0 %v714
    %746 = vmatpush.msra.mxu0 %v713
    %747 = vmatpush.msra.mxu0 %v712
    %748 = vmatmul.f32.gmra.mxu0 %v721
    %v749 = vpop.f32.mrf.mxu0
    %750 = vmatmul.f32.gmra.mxu0 %v724
    %v751 = vpop.f32.mrf.mxu0
    %v752 = vadd.f32 0.0, %v751
    %753 = vmatmul.f32.gmra.mxu0 %v727
    %v754 = vpop.f32.mrf.mxu0
    %v755 = vadd.f32 0.0, %v754
    %756 = vmatmul.f32.gmra.mxu0 %v730
    %v757 = vpop.f32.mrf.mxu0
    %758 = vdwg.mxu0
    %v759 = vadd.f32 %v705, %v752
    %v760 = vadd.f32 %v708, %v755
    %v761 = vld [vmem:[%s12] sm:$0x1]
    %v763 = vperm.slane %v761, 0
    %v765 = vadd.f32 %v759, %v763
    %v766 = vadd.f32 %v760, %v763
    %v767 = vmax.f32 %v765, 0.0
    %v768 = vmax.f32 %v766, 0.0
    %v769 = vld [vmem:[%s13] sm:$0x1]
    %v771 = vperm.slane %v769, 0
    %v773 = vmul.f32 %v767, %v771
    %v774 = vmul.f32 %v768, %v771
    %v775 = vsel %vm354, %v773, 0.0
    %776 = vadd.xlane.f32.xlu0 %v775
    %v777 = vpop.xlane.xlu0 %776
    %v778 = vsel %vm354, %v774, 0.0
    %779 = vadd.xlane.f32.xlu0 %v778
    %v780 = vpop.xlane.xlu0 %779
    %v781 = vld [vmem:[#allocation3] sm:$0x1]
    %v783 = vperm.slane %v781, 0
    %v785 = vadd.f32 %v777, %v783
    %v786 = vadd.f32 %v780, %v783
    %vm787 = vcmask 7168
    %788 = vst.msk [vmem:[%s15] sm:$0xff] %vm787, %v785
    %789 = vst.msk [vmem:[%s15 + $0x8] sm:$0xff] %vm787, %v786
    // Predicated region
    $region102: #{tpu_custom_call.1} parent=1 // pred_check
      _
    $region103: #{tpu_custom_call.1} parent=1 // pred_check_branch
      %791 = sbr.rel (0) target = $region105
    $region104: #{tpu_custom_call.1} parent=1 // pred_region
      _
    $region105: #{tpu_custom_call.1} parent=1 // pred_fallthru
      _
    // Predicated region
    $region106: #{tpu_custom_call.1} parent=1 // pred_check
      _
    $region107: #{tpu_custom_call.1} parent=1 // pred_check_branch
      %793 = sbr.rel (0) target = $region109
    $region108: #{tpu_custom_call.1} parent=1 // pred_region
      _
    $region109: #{tpu_custom_call.1} parent=1 // pred_fallthru
      _
    %794 = vsyncpa [#allocation5], 1
    %795 = vsyncpa [#allocation7], 1
    %796 = vsyncpa [#allocation10], 1
    %797 = vsyncpa [#allocation13], 1
    %798 = vsyncpa [#allocation16], 1

</llo_original>
